<compile_context>
chip_gen: v7x
topology: tpu7x:2x2x1
jax: 0.10.0
libtpu: 0.0.40
codegen_flags: <defaults>
</compile_context>

<pallas_src>
import jax
import jax.numpy as jnp
from jax.experimental import pallas as pl
from jax.experimental.pallas import tpu as pltpu

_EPS = 1e-8
_LANE_CHOICES = (1024, 512, 256, 128)
_TINY_FAST_PATH_ELEMS = 64 * 1024  # below this, plain jnp is as fast or faster


def _round_up(x, m):
    return ((x + m - 1) // m) * m


def _kl_jnp(px, py, out_dtype):
    # Same math as the kernel (f32 compute, single log) for path consistency.
    px32 = px.astype(jnp.float32)
    py32 = py.astype(jnp.float32)
    return (px32 * jnp.log((px32 + _EPS) / (py32 + _EPS))).astype(out_dtype)


def _kl_kernel(px_ref, py_ref, o_ref):
    # NOTE: in a partial last block the overhanging region holds unspecified
    # VMEM data, so log/div may produce NaN/Inf *in-register* there.  Harmless
    # today because the overhanging output stores are masked by Pallas, but it
    # must be revisited if a reduction is ever fused into this kernel.
    px = px_ref[...].astype(jnp.float32)   # cast in-kernel: no extra HBM pass
    py = py_ref[...].astype(jnp.float32)
    # Single EUP log per element; reassociation of log(px+eps) - log(py+eps).
    kl = px * jnp.log((px + _EPS) / (py + _EPS))
    o_ref[...] = kl.astype(o_ref.dtype)


def _tpu_generation_params():
    """Returns (target block elems per operand, #TensorCores sharing the grid)."""
    try:
        kind = jax.devices()[0].device_kind.lower()
    except Exception:
        kind = ""
    # Conservative default: ~1 MiB f32/operand -> 3 operands x 2 pipeline
    # buffers = 6 MiB, safely under every generation's scoped-VMEM default.
    target_elems, num_tc = 256 * 1024, 1
    if ("v5e" in kind) or ("v5 lite" in kind) or ("v5lite" in kind):
        target_elems, num_tc = 256 * 1024, 1      # 16 MiB scoped default
    elif "v6" in kind:
        target_elems, num_tc = 1024 * 1024, 1     # 24 MiB < 32 MiB scoped
    elif "v7" in kind:
        target_elems, num_tc = 1024 * 1024, 2     # 3.2 TB/s HBM, 2 TCs/chip
    return target_elems, num_tc


def _kl_pallas_2d(px2, py2, out_dtype, target_elems, num_tc):
    rows, lanes = px2.shape

    # Block sizing: ~target_elems per operand per grid step.
    rows_per_block = max(8, target_elems // lanes)
    num_blocks = pl.cdiv(rows, rows_per_block)
    if num_tc >= 2 and rows >= 16:
        # Keep both v7x TensorCores busy: grid of at least 2 and even.
        if num_blocks < 2:
            num_blocks = 2
        elif num_blocks % 2:
            num_blocks += 1
    rows_per_block = min(_round_up(pl.cdiv(rows, num_blocks), 8), rows)
    grid = (pl.cdiv(rows, rows_per_block),)

    spec = pl.BlockSpec((rows_per_block, lanes), lambda i: (i, 0))

    n = rows * lanes
    in_bytes = (px2.size * px2.dtype.itemsize
                + py2.size * py2.dtype.itemsize)
    out_bytes = n * out_dtype.itemsize

    return pl.pallas_call(
        _kl_kernel,
        out_shape=jax.ShapeDtypeStruct((rows, lanes), out_dtype),
        grid_spec=pltpu.PrefetchScalarGridSpec(
            num_scalar_prefetch=0,
            grid=grid,
            in_specs=[spec, spec],
            out_specs=spec,
        ),
        compiler_params=pltpu.CompilerParams(
            dimension_semantics=("parallel",),
        ),
        cost_estimate=pl.CostEstimate(
            flops=5 * n,
            transcendentals=n,
            bytes_accessed=in_bytes + out_bytes,
        ),
    )(px2, py2)


def kl_divergence_pallas(px, py, *, min_pallas_elems=_TINY_FAST_PATH_ELEMS):
    assert px.shape == py.shape, "px and py must have the same shape"
    orig_shape = px.shape
    out_dtype = jnp.result_type(px.dtype, py.dtype)

    pxf = px.reshape(-1)
    pyf = py.reshape(-1)
    n = pxf.shape[0]

    # Tiny-input fast path: pallas_call launch + pipeline prologue dominates
    # for micro-tensors; XLA's fused elementwise path is as fast or faster.
    if n == 0 or n < min_pallas_elems:
        return _kl_jnp(px, py, out_dtype)

    target_elems, num_tc = _tpu_generation_params()

    # Widest lane-dense slab width that divides n (no padding, no copies).
    lanes = None
    for cand in _LANE_CHOICES:
        if n % cand == 0:
            lanes = cand
            break

    if lanes is not None:
        out2 = _kl_pallas_2d(
            pxf.reshape(n // lanes, lanes),
            pyf.reshape(n // lanes, lanes),
            out_dtype, target_elems, num_tc)
        return out2.reshape(orig_shape)

    # Ragged fallback (n % 128 != 0; rare for NCHW tensors): kernel on the
    # 128-aligned prefix, <128-element tail in plain jnp.  Avoids the old
    # pad-both-inputs + slice-output extra HBM passes (the prefix slices are
    # the only remaining copies, unavoidable at the pallas_call boundary).
    lanes = 128
    n_main = (n // lanes) * lanes
    if n_main == 0:
        return _kl_jnp(px, py, out_dtype)
    main = _kl_pallas_2d(
        pxf[:n_main].reshape(n_main // lanes, lanes),
        pyf[:n_main].reshape(n_main // lanes, lanes),
        out_dtype, target_elems, num_tc).reshape(-1)
    tail = _kl_jnp(pxf[n_main:], pyf[n_main:], out_dtype)
    return jnp.concatenate([main, tail]).reshape(orig_shape)


if __name__ == "__main__":
    key = jax.random.PRNGKey(0)
    k1, k2, k3, k4 = jax.random.split(key, 4)

    def make_prob(k, shape):
        x = jax.random.normal(k, shape, jnp.float32)
        return jax.nn.softmax(x.reshape(shape[0], -1), axis=-1).reshape(shape)

    def ref_kl(px, py):
        # Matches the PyTorch module exactly (two logs).
        return px * (jnp.log(px + _EPS) - jnp.log(py + _EPS))

    # (1) Pallas kernel path (forced, since the test shape is small) on a
    #     128-divisible NCHW probability map.
    shape = (2, 4, 16, 16)
    px = make_prob(k1, shape)
    py = make_prob(k2, shape)
    out = kl_divergence_pallas(px, py, min_pallas_elems=0)
    jax.block_until_ready(out)
    assert out.shape == shape
    assert out.dtype == jnp.result_type(px.dtype, py.dtype)
    assert jnp.allclose(out, ref_kl(px, py), atol=1e-6, rtol=1e-6)

    # (2) Ragged shape (n % 128 != 0): prefix-kernel + jnp-tail fallback.
    rshape = (3, 5, 30)  # 450 elements -> 384 via kernel, 66 via jnp
    pxr = make_prob(k3, rshape)
    pyr = make_prob(k4, rshape)
    outr = kl_divergence_pallas(pxr, pyr, min_pallas_elems=0)
    jax.block_until_ready(outr)
    assert outr.shape == rshape
    assert jnp.allclose(outr, ref_kl(pxr, pyr), atol=1e-6, rtol=1e-6)

    # (3) Default call on a tiny input exercises the jnp fast path; semantics
    #     are identical.
    outd = kl_divergence_pallas(px, py)
    jax.block_until_ready(outd)
    assert jnp.allclose(outd, ref_kl(px, py), atol=1e-6, rtol=1e-6)

    print("KERNEL_OK")
</pallas_src>

<mosaic_0001>
module attributes {stable_mosaic.version = 11 : i64} {
  func.func @_kl_kernel(%arg0: i32, %arg1: memref<2x1024xf32, #tpu.memory_space<vmem>>, %arg2: memref<2x1024xf32, #tpu.memory_space<vmem>>, %arg3: memref<2x1024xf32, #tpu.memory_space<vmem>>) attributes {dimension_semantics = [#tpu.dimension_semantics<parallel>], iteration_bounds = array<i64: 1>, scalar_prefetch = 0 : i64, scratch_operands = 0 : i64, tpu.core_type = #tpu.core_type<tc>, window_params = [{transform_indices = @transform_0, window_bounds = array<i64: 2, 1024>}, {transform_indices = @transform_1, window_bounds = array<i64: 2, 1024>}, {transform_indices = @transform_2, window_bounds = array<i64: 2, 1024>}]} {
    %c0 = arith.constant 0 : index
    %c0_0 = arith.constant 0 : index
    %0 = vector.load %arg1[%c0, %c0_0] : memref<2x1024xf32, #tpu.memory_space<vmem>>, vector<2x1024xf32>
    %c0_1 = arith.constant 0 : index
    %c0_2 = arith.constant 0 : index
    %1 = vector.load %arg2[%c0_1, %c0_2] : memref<2x1024xf32, #tpu.memory_space<vmem>>, vector<2x1024xf32>
    %cst = arith.constant 9.99999993E-9 : f32
    %2 = vector.broadcast %cst : f32 to vector<2x1024xf32>
    %3 = arith.addf %0, %2 : vector<2x1024xf32>
    %cst_3 = arith.constant 9.99999993E-9 : f32
    %4 = vector.broadcast %cst_3 : f32 to vector<2x1024xf32>
    %5 = arith.addf %1, %4 : vector<2x1024xf32>
    %6 = arith.divf %3, %5 : vector<2x1024xf32>
    %7 = math.log %6 : vector<2x1024xf32>
    %8 = arith.mulf %0, %7 : vector<2x1024xf32>
    %c0_4 = arith.constant 0 : index
    %c0_5 = arith.constant 0 : index
    %9 = vector.load %arg3[%c0_4, %c0_5] : memref<2x1024xf32, #tpu.memory_space<vmem>>, vector<2x1024xf32>
    tpu.vector_store %arg3[%c0_4, %c0_5], %8 {strides = array<i32>} : memref<2x1024xf32, #tpu.memory_space<vmem>>, vector<2x1024xf32>,
    return
  }
  func.func @transform_0(%arg0: i32) -> (i32, i32) {
    %c0_i32 = arith.constant 0 : i32
    %c0_i32_0 = arith.constant 0 : i32
    return %arg0, %c0_i32 : i32, i32
  }
  func.func @transform_1(%arg0: i32) -> (i32, i32) {
    %c0_i32 = arith.constant 0 : i32
    %c0_i32_0 = arith.constant 0 : i32
    return %arg0, %c0_i32 : i32, i32
  }
  func.func @transform_2(%arg0: i32) -> (i32, i32) {
    %c0_i32 = arith.constant 0 : i32
    %c0_i32_0 = arith.constant 0 : i32
    return %arg0, %c0_i32 : i32, i32
  }
}

</mosaic_0001>

<llo_original>
// kernel: tpu_custom_call.1
$region0: #{tpu_custom_call.1}
  #allocation0 [shape = 'u32[]', space=smem, size = 0x4, offset = 0x4, fixed_abs, tag = 'smem constant byte address 0x4 - core index']
  #allocation1 [shape = 'u32[144,128]{1,0:T(1,128)}', space=vmem, size = 0x12000, scoped, tag = 'internal scratch']
  %s0 = inlined_call_operand.hbm [shape: f32[2,1024], index: 0, kind: input, shape index: {}]
  %s1 = inlined_call_operand.hbm [shape: f32[2,1024], index: 1, kind: input, shape index: {}]
  %s2 = inlined_call_operand.hbm [shape: f32[2,1024], index: 2, kind: output, shape index: {}]
  %s3 = sld [smem:[#allocation0]]
  $region26: #{tpu_custom_call.1} parent=0
    _
  %s5 = ssub.s32 1, %s3
  %s6 = scalar_select 0, %s5, %s3
  $region1: #{tpu_custom_call.1} parent=0
    #allocation2 [shape = 'u8[8192]{0}', space=vmem, size = 0x2000, scoped, tag = 'input window, operand 0, single buffered']
    #allocation3 [shape = 's32[1]{0}', space=sflag, size = 0x4, scoped, tag = 'scoped memory for tpu_custom_call.1']
    #allocation4 [shape = 's32[1]{0}', space=sflag, size = 0x4, scoped, tag = 'scoped memory for tpu_custom_call.1']
    #allocation5 [shape = 'u8[8192]{0}', space=vmem, size = 0x2000, scoped, tag = 'input window, operand 1, single buffered']
    #allocation6 [shape = 's32[1]{0}', space=sflag, size = 0x4, scoped, tag = 'scoped memory for tpu_custom_call.1']
    #allocation7 [shape = 'u8[8192]{0}', space=vmem, size = 0x2000, scoped, tag = 'output window, operand 0, single buffered']
    %7 = vsyncpa [#allocation3], 0
    %8 = vsyncpa [#allocation6], 0
    %9 = vsyncpa [#allocation4], 0
    // Predicated region
    $region2: #{tpu_custom_call.1} parent=1 // pred_check
      _
    $region3: #{tpu_custom_call.1} parent=1 // pred_check_branch
      %11 = sbr.rel (0) target = $region5
    $region4: #{tpu_custom_call.1} parent=1 // pred_region
      %s13 = ssub.s32 256, 256
      %14 = vsyncadd [#allocation3], %s13
      %s16 = sshll.u32 [#allocation2], 4
      %s17 = int_to_ptr.vmem [resolvable:$true] %s16
      %19 = dma.hbm_to_vmem [thread:$0]  %s0, 256, %s17, [#allocation3]
    $region5: #{tpu_custom_call.1} parent=1 // pred_fallthru
      _
    // Predicated region
    $region6: #{tpu_custom_call.1} parent=1 // pred_check
      _
    $region7: #{tpu_custom_call.1} parent=1 // pred_check_branch
      %21 = sbr.rel (0) target = $region9
    $region8: #{tpu_custom_call.1} parent=1 // pred_region
      %s23 = ssub.s32 256, 256
      %24 = vsyncadd [#allocation6], %s23
      %s26 = sshll.u32 [#allocation5], 4
      %s27 = int_to_ptr.vmem [resolvable:$true] %s26
      %29 = dma.hbm_to_vmem [thread:$0]  %s1, 256, %s27, [#allocation6]
    $region9: #{tpu_custom_call.1} parent=1 // pred_fallthru
      _
    // Predicated region
    $region10: #{tpu_custom_call.1} parent=1 // pred_check
      _
    $region11: #{tpu_custom_call.1} parent=1 // pred_check_branch
      %31 = sbr.rel (0) target = $region13
    $region12: #{tpu_custom_call.1} parent=1 // pred_region
      %32 = dma.done [#allocation3], 256
    $region13: #{tpu_custom_call.1} parent=1 // pred_fallthru
      _
    // Predicated region
    $region14: #{tpu_custom_call.1} parent=1 // pred_check
      _
    $region15: #{tpu_custom_call.1} parent=1 // pred_check_branch
      %34 = sbr.rel (0) target = $region17
    $region16: #{tpu_custom_call.1} parent=1 // pred_region
      %35 = dma.done [#allocation6], 256
    $region17: #{tpu_custom_call.1} parent=1 // pred_fallthru
      _
    %v36 = vld [vmem:[#allocation2] sm:$0xff]
    %v37 = vld [vmem:[#allocation2 + $0x8] sm:$0xff]
    %v38 = vld [vmem:[#allocation5] sm:$0xff]
    %v39 = vld [vmem:[#allocation5 + $0x8] sm:$0xff]
    %v40 = vadd.f32 %v36, 1e-08
    %v41 = vadd.f32 %v37, 1e-08
    %v42 = vadd.f32 %v38, 1e-08
    %v43 = vadd.f32 %v39, 1e-08
    %v44 = vrcp.pop %v42
    %v45 = vmul.f32 %v40, %v44
    %v46 = vrcp.pop %v43
    %v47 = vmul.f32 %v41, %v46
    %v48 = vlog2.pop %v45
    %v49 = vmul.f32 %v48, 0.6931472
    %v50 = vlog2.pop %v47
    %v51 = vmul.f32 %v50, 0.6931472
    %v52 = vmul.f32 %v36, %v49
    %v53 = vmul.f32 %v37, %v51
    %54 = vst [vmem:[#allocation7] sm:$0xff] %v52
    %55 = vst [vmem:[#allocation7 + $0x8] sm:$0xff] %v53
    // Predicated region
    $region18: #{tpu_custom_call.1} parent=1 // pred_check
      _
    $region19: #{tpu_custom_call.1} parent=1 // pred_check_branch
      %57 = sbr.rel (0) target = $region21
    $region20: #{tpu_custom_call.1} parent=1 // pred_region
      %s59 = ssub.s32 256, 256
      %60 = vsyncadd [#allocation4], %s59
      %s62 = sshll.u32 [#allocation7], 4
      %s63 = int_to_ptr.vmem [resolvable:$true] %s62
      %65 = dma.vmem_to_hbm [thread:$0]  %s63, 256, %s2, [#allocation4]
    $region21: #{tpu_custom_call.1} parent=1 // pred_fallthru
      _
    // Predicated region
    $region22: #{tpu_custom_call.1} parent=1 // pred_check
      _
    $region23: #{tpu_custom_call.1} parent=1 // pred_check_branch
      %67 = sbr.rel (0) target = $region25
    $region24: #{tpu_custom_call.1} parent=1 // pred_region
      %68 = dma.done [#allocation4], 256
    $region25: #{tpu_custom_call.1} parent=1 // pred_fallthru
      _
    %69 = vsyncpa [#allocation3], 1
    %70 = vsyncpa [#allocation6], 1
    %71 = vsyncpa [#allocation4], 1

</llo_original>
